<compile_context>
chip_gen: v6e
topology: v6e:2x2x1
jax: 0.10.0
libtpu: 0.0.40
codegen_flags: <defaults>
</compile_context>

<pallas_src>
import functools

import jax
import jax.numpy as jnp
from jax.experimental import pallas as pl
from jax.experimental.pallas import tpu as pltpu

UPDATE_BIAS = -1.0


# ----------------------------------------------------------------------------
# Parameter prep (one-time, NOT in the per-step path)
# ----------------------------------------------------------------------------
def _pick_col_tile(inp_size, size, weight_bytes_budget=16 * 1024 * 1024):
    """Column tile tn over the hidden size. Single tile unless the bf16
    single-buffered weight tile would exceed the VMEM budget."""
    if size % 128 != 0:
        return size          # small / unaligned sizes: one tile (full dim)
    for tn in (size, 1024, 512, 256, 128):
        if tn <= size and size % tn == 0:
            if (inp_size + size) * 3 * tn * 2 <= weight_bytes_budget:
                return tn
    return 128


def _interleave_gate_columns(w, size, tn):
    """[K, 3*size] in gate-major [r|c|u] order -> per-column-tile interleaved
    order: tile j holds [r_j | c_j | u_j], each tn wide. Identity if tn==size."""
    if tn == size:
        return w
    K = w.shape[0]
    nj = size // tn
    w = w.reshape(K, 3, nj, tn)
    w = jnp.transpose(w, (0, 2, 1, 3))      # [K, nj, 3, tn]
    return w.reshape(K, 3 * size)


def prepare_gru_params(weight, bias, inp_size, size,
                       update_bias=UPDATE_BIAS, matmul_dtype=jnp.bfloat16,
                       col_tile=None):
    """One-time conversion from the PyTorch nn.Linear layout.

    weight: [3*size, inp_size + size]   bias: [3*size]
    Returns pre-transposed, tile-interleaved matmul-dtype weights and a single
    f32 bias row (update_bias folded into the update-gate columns).
    """
    w_t = weight.T.astype(jnp.float32)        # [inp+size, 3*size]
    wx = w_t[:inp_size, :]                    # [inp,  3*size]
    wh = w_t[inp_size:, :]                    # [size, 3*size]
    b = bias.astype(jnp.float32).reshape(1, 3 * size)
    b = b.at[:, 2 * size:].add(jnp.float32(update_bias))   # fold update bias

    tn = int(col_tile) if col_tile is not None else _pick_col_tile(inp_size, size)
    assert size % tn == 0, "col_tile must divide size"

    wx = _interleave_gate_columns(wx, size, tn).astype(matmul_dtype)
    wh = _interleave_gate_columns(wh, size, tn).astype(matmul_dtype)
    b = _interleave_gate_columns(b, size, tn)
    return dict(wx=wx, wh=wh, b=b, tn=tn, size=size, inp_size=inp_size)


def _pick_batch_tile(batch):
    # `>=` so B itself is selectable; multiples of 16 keep bf16 sublane rows
    # fully packed; prefer large tiles (fewer ~0.35us grid steps).
    for tm in (256, 128, 64, 32, 16):
        if batch >= tm and batch % tm == 0:
            return tm
    return batch


def _vmem_limit_bytes():
    # 48 MiB on v5e/v6e (128 MiB VMEM), ~38 MiB on v7x (64 MiB VMEM).
    try:
        cap = int(pltpu.get_tpu_info().vmem_capacity_bytes)
    except Exception:
        cap = 64 * 1024 * 1024
    return min((cap * 3) // 5, 48 * 1024 * 1024)


# ----------------------------------------------------------------------------
# Single-step kernel (the module's forward), N-tiled over the hidden size
# ----------------------------------------------------------------------------
def _make_gru_step_kernel(tn):
    def kernel(x_ref, h_ref, wx_ref, wh_ref, b_ref, out_ref):
        # x_ref:[tm,inp]  h_ref:[tm,size]  wx_ref:[inp,3*tn]  wh_ref:[size,3*tn]
        # b_ref:[1,3*tn] (f32, update_bias folded)  out_ref:[tm,tn]
        x_mm = x_ref[...].astype(jnp.bfloat16)
        h_full = h_ref[...]                       # single load, reused below
        h_mm = h_full.astype(jnp.bfloat16)
        # Two fused bf16 MXU matmuls, f32 accumulation; bias added once in f32.
        parts = (jnp.dot(x_mm, wx_ref[...], preferred_element_type=jnp.float32)
                 + jnp.dot(h_mm, wh_ref[...], preferred_element_type=jnp.float32)
                 + b_ref[...])                     # [tm, 3*tn]
        reset = jax.nn.sigmoid(parts[:, 0:tn])
        cand = jnp.tanh(reset * parts[:, tn:2 * tn])
        update = jax.nn.sigmoid(parts[:, 2 * tn:3 * tn])   # bias incl. -1
        if tn == h_ref.shape[1]:
            h_cols = h_full.astype(jnp.float32)
        else:
            col0 = pl.multiple_of(pl.program_id(0) * tn, tn)
            h_cols = h_ref[:, pl.ds(col0, tn)].astype(jnp.float32)
        out_ref[...] = (update * cand + (1.0 - update) * h_cols).astype(out_ref.dtype)
    return kernel


def gru_cell_forward(inputs, state, params):
    """Pallas GRUCell forward.  inputs:[B,inp]  state:[B,size].
    Returns (output, [output]) mirroring the PyTorch module."""
    B, inp_size = inputs.shape
    size, tn = params["size"], params["tn"]
    tm = _pick_batch_tile(B)
    nj, ni = size // tn, B // tm
    # Column axis outermost so a weight column tile stays VMEM-resident while
    # all batch tiles stream through it; both axes are independent -> parallel
    # (lets v7x megacore split columns rather than duplicating weight DMA).
    grid = (nj, ni)
    buf1 = pl.Buffered(1)   # constant/slowly-varying blocks: single buffer

    out = pl.pallas_call(
        _make_gru_step_kernel(tn),
        out_shape=jax.ShapeDtypeStruct((B, size), state.dtype),
        grid_spec=pltpu.PrefetchScalarGridSpec(
            num_scalar_prefetch=0,
            grid=grid,
            in_specs=[
                pl.BlockSpec((tm, inp_size), lambda j, i: (i, 0)),   # x
                pl.BlockSpec((tm, size), lambda j, i: (i, 0)),       # h (full K)
                pl.BlockSpec((inp_size, 3 * tn), lambda j, i: (0, j),
                             pipeline_mode=buf1),                    # Wx tile
                pl.BlockSpec((size, 3 * tn), lambda j, i: (0, j),
                             pipeline_mode=buf1),                    # Wh tile
                pl.BlockSpec((1, 3 * tn), lambda j, i: (0, j),
                             pipeline_mode=buf1),                    # bias tile
            ],
            out_specs=pl.BlockSpec((tm, tn), lambda j, i: (i, j)),
        ),
        compiler_params=pltpu.CompilerParams(
            dimension_semantics=("parallel", "parallel"),
            vmem_limit_bytes=_vmem_limit_bytes(),
        ),
    )(inputs, state, params["wx"], params["wh"], params["b"])
    return out, [out]


# ----------------------------------------------------------------------------
# Fused time-scan kernel (the typical RSSM use): weights loaded once, state
# carried across T in a VMEM f32 scratch.
# ----------------------------------------------------------------------------
def _gru_scan_kernel(x_ref, h0_ref, wx_ref, wh_ref, b_ref, out_ref, h_scr):
    # x_ref:[1,tm,inp]  h0_ref:[tm,size]  wx_ref:[inp,3*size]  wh_ref:[size,3*size]
    # b_ref:[1,3*size]  out_ref:[1,tm,size]  h_scr:[tm,size] f32 carried state
    size = h_scr.shape[-1]
    t = pl.program_id(1)

    @pl.when(t == 0)
    def _():
        h_scr[...] = h0_ref[...].astype(jnp.float32)

    h_f32 = h_scr[...]
    x_mm = x_ref[0].astype(jnp.bfloat16)
    h_mm = h_f32.astype(jnp.bfloat16)
    parts = (jnp.dot(x_mm, wx_ref[...], preferred_element_type=jnp.float32)
             + jnp.dot(h_mm, wh_ref[...], preferred_element_type=jnp.float32)
             + b_ref[...])
    reset = jax.nn.sigmoid(parts[:, 0:size])
    cand = jnp.tanh(reset * parts[:, size:2 * size])
    update = jax.nn.sigmoid(parts[:, 2 * size:3 * size])
    h_new = update * cand + (1.0 - update) * h_f32
    h_scr[...] = h_new
    out_ref[0] = h_new.astype(out_ref.dtype)


def gru_cell_scan(x_seq, state0, params):
    """Run the GRU cell over a whole sequence.  x_seq:[T,B,inp]  state0:[B,size].
    Returns all hidden states [T,B,size] (last row is the final state)."""
    T, B, inp_size = x_seq.shape
    size = params["size"]
    if params["tn"] != size:
        raise ValueError("gru_cell_scan needs single-column-tile params; call "
                         "prepare_gru_params(..., col_tile=size).")
    tm = _pick_batch_tile(B)
    grid = (B // tm, T)   # T innermost ("arbitrary": sequential recurrence)
    buf1 = pl.Buffered(1)

    return pl.pallas_call(
        _gru_scan_kernel,
        out_shape=jax.ShapeDtypeStruct((T, B, size), state0.dtype),
        grid_spec=pltpu.PrefetchScalarGridSpec(
            num_scalar_prefetch=0,
            grid=grid,
            in_specs=[
                pl.BlockSpec((1, tm, inp_size), lambda i, t: (t, i, 0)),  # x_t
                pl.BlockSpec((tm, size), lambda i, t: (i, 0)),            # h0
                pl.BlockSpec((inp_size, 3 * size), lambda i, t: (0, 0),
                             pipeline_mode=buf1),                         # Wx
                pl.BlockSpec((size, 3 * size), lambda i, t: (0, 0),
                             pipeline_mode=buf1),                         # Wh
                pl.BlockSpec((1, 3 * size), lambda i, t: (0, 0),
                             pipeline_mode=buf1),                         # bias
            ],
            out_specs=pl.BlockSpec((1, tm, size), lambda i, t: (t, i, 0)),
            scratch_shapes=[pltpu.VMEM((tm, size), jnp.float32)],
        ),
        compiler_params=pltpu.CompilerParams(
            dimension_semantics=("parallel", "arbitrary"),
            vmem_limit_bytes=_vmem_limit_bytes(),
        ),
    )(x_seq, state0, params["wx"], params["wh"], params["b"])


# ----------------------------------------------------------------------------
# Pure-JAX f32 reference (matches the PyTorch forward)
# ----------------------------------------------------------------------------
def gru_cell_reference(inputs, state, weight, bias):
    xh = jnp.concatenate([inputs, state], axis=-1)
    parts = xh @ weight.T + bias
    size = state.shape[-1]
    reset, cand, update = jnp.split(parts, 3, axis=-1)
    reset = jax.nn.sigmoid(reset)
    cand = jnp.tanh(reset * cand)
    update = jax.nn.sigmoid(update + UPDATE_BIAS)
    return update * cand + (1.0 - update) * state


def _make_linear_params(key, inp_size, size):
    k_w, k_b = jax.random.split(key)
    bound = 1.0 / jnp.sqrt(jnp.float32(inp_size + size))
    weight = jax.random.uniform(k_w, (3 * size, inp_size + size),
                                minval=-bound, maxval=bound, dtype=jnp.float32)
    bias = jax.random.uniform(k_b, (3 * size,),
                              minval=-bound, maxval=bound, dtype=jnp.float32)
    return weight, bias


if __name__ == "__main__":
    key = jax.random.PRNGKey(0)
    k1, k2, k3, k4, k5, k6 = jax.random.split(key, 6)

    # ---- Test 1: single step, lane-dense hidden size (single column tile) ----
    B, inp_size, size = 16, 32, 128
    inputs = jax.random.normal(k1, (B, inp_size), dtype=jnp.float32)
    state = jax.random.normal(k2, (B, size), dtype=jnp.float32)
    weight, bias = _make_linear_params(k3, inp_size, size)
    params = prepare_gru_params(weight, bias, inp_size, size)

    out, out_list = gru_cell_forward(inputs, state, params)
    out = jax.block_until_ready(out)
    ref = gru_cell_reference(inputs, state, weight, bias)
    assert out.shape == (B, size)
    assert jnp.allclose(out, ref, atol=2e-2, rtol=2e-2)   # bf16 matmul operands
    assert jnp.array_equal(out, out_list[0])

    # ---- Test 2: N-tiled hidden size (size=256, col_tile=128 -> 2 tiles) ----
    size2 = 256
    inputs2 = jax.random.normal(k4, (B, inp_size), dtype=jnp.float32)
    state2 = jax.random.normal(k5, (B, size2), dtype=jnp.float32)
    weight2, bias2 = _make_linear_params(k6, inp_size, size2)
    params2 = prepare_gru_params(weight2, bias2, inp_size, size2, col_tile=128)

    out2, _ = gru_cell_forward(inputs2, state2, params2)
    out2 = jax.block_until_ready(out2)
    ref2 = gru_cell_reference(inputs2, state2, weight2, bias2)
    assert out2.shape == (B, size2)
    assert jnp.allclose(out2, ref2, atol=2e-2, rtol=2e-2)

    # ---- Test 3: fused time scan (weights DMA'd once, state in VMEM) ----
    T = 6
    x_seq = jax.random.normal(k4, (T, B, inp_size), dtype=jnp.float32)
    out_seq = jax.block_until_ready(gru_cell_scan(x_seq, state, params))

    h = state
    ref_steps = []
    for t in range(T):
        h = gru_cell_reference(x_seq[t], h, weight, bias)
        ref_steps.append(h)
    ref_seq = jnp.stack(ref_steps, axis=0)
    assert out_seq.shape == (T, B, size)
    # bf16 recurrent operand -> small per-step drift over T steps.
    assert jnp.allclose(out_seq, ref_seq, atol=3e-2, rtol=3e-2)

    print("KERNEL_OK")
</pallas_src>

<mosaic_0001>
module attributes {stable_mosaic.version = 11 : i64} {
  func.func @kernel(%arg0: i32, %arg1: i32, %arg2: memref<16x32xf32, #tpu.memory_space<vmem>>, %arg3: memref<16x128xf32, #tpu.memory_space<vmem>>, %arg4: memref<32x384xbf16, #tpu.memory_space<vmem>>, %arg5: memref<128x384xbf16, #tpu.memory_space<vmem>>, %arg6: memref<1x384xf32, #tpu.memory_space<vmem>>, %arg7: memref<16x128xf32, #tpu.memory_space<vmem>>) attributes {dimension_semantics = [#tpu.dimension_semantics<parallel>, #tpu.dimension_semantics<parallel>], iteration_bounds = array<i64: 1, 1>, scalar_prefetch = 0 : i64, scratch_operands = 0 : i64, tpu.core_type = #tpu.core_type<tc>, window_params = [{transform_indices = @transform_0, window_bounds = array<i64: 16, 32>}, {transform_indices = @transform_1, window_bounds = array<i64: 16, 128>}, {pipeline_mode = #tpu.pipeline_mode<synchronous>, transform_indices = @transform_2, window_bounds = array<i64: 32, 384>}, {pipeline_mode = #tpu.pipeline_mode<synchronous>, transform_indices = @transform_3, window_bounds = array<i64: 128, 384>}, {pipeline_mode = #tpu.pipeline_mode<synchronous>, transform_indices = @transform_4, window_bounds = array<i64: 1, 384>}, {transform_indices = @transform_5, window_bounds = array<i64: 16, 128>}]} {
    %c0 = arith.constant 0 : index
    %c0_0 = arith.constant 0 : index
    %0 = vector.load %arg2[%c0, %c0_0] : memref<16x32xf32, #tpu.memory_space<vmem>>, vector<16x32xf32>
    %1 = arith.truncf %0 : vector<16x32xf32> to vector<16x32xbf16>
    %c0_1 = arith.constant 0 : index
    %c0_2 = arith.constant 0 : index
    %2 = vector.load %arg3[%c0_1, %c0_2] : memref<16x128xf32, #tpu.memory_space<vmem>>, vector<16x128xf32>
    %3 = arith.truncf %2 : vector<16x128xf32> to vector<16x128xbf16>
    %c0_3 = arith.constant 0 : index
    %c0_4 = arith.constant 0 : index
    %4 = vector.load %arg4[%c0_3, %c0_4] : memref<32x384xbf16, #tpu.memory_space<vmem>>, vector<32x384xbf16>
    %cst = arith.constant dense<0.000000e+00> : vector<16x384xf32>
    %5 = tpu.matmul %1, %4, %cst {dimension_numbers = #tpu.dot_dimension_numbers<[1], [0], [0], [1], [0, 0, 1, 1], [], []>} : vector<16x32xbf16>, vector<32x384xbf16>, vector<16x384xf32> -> vector<16x384xf32>
    %c0_5 = arith.constant 0 : index
    %c0_6 = arith.constant 0 : index
    %6 = vector.load %arg5[%c0_5, %c0_6] : memref<128x384xbf16, #tpu.memory_space<vmem>>, vector<128x384xbf16>
    %cst_7 = arith.constant dense<0.000000e+00> : vector<16x384xf32>
    %7 = tpu.matmul %3, %6, %cst_7 {dimension_numbers = #tpu.dot_dimension_numbers<[1], [0], [0], [1], [0, 0, 1, 1], [], []>} : vector<16x128xbf16>, vector<128x384xbf16>, vector<16x384xf32> -> vector<16x384xf32>
    %8 = arith.addf %5, %7 : vector<16x384xf32>
    %c0_8 = arith.constant 0 : index
    %c0_9 = arith.constant 0 : index
    %9 = vector.load %arg6[%c0_8, %c0_9] : memref<1x384xf32, #tpu.memory_space<vmem>>, vector<1x384xf32>
    %10 = vector.broadcast %9 : vector<1x384xf32> to vector<16x384xf32>
    %11 = arith.addf %8, %10 : vector<16x384xf32>
    %12 = vector.extract_strided_slice %11 {offsets = [0, 0], sizes = [16, 128], strides = [1, 1]} : vector<16x384xf32> to vector<16x128xf32>
    %13 = arith.negf %12 : vector<16x128xf32>
    %14 = math.exp %13 : vector<16x128xf32>
    %cst_10 = arith.constant 1.000000e+00 : f32
    %15 = vector.broadcast %cst_10 : f32 to vector<16x128xf32>
    %16 = arith.addf %15, %14 : vector<16x128xf32>
    %17 = arith.divf %15, %16 : vector<16x128xf32>
    %18 = vector.extract_strided_slice %11 {offsets = [0, 128], sizes = [16, 128], strides = [1, 1]} : vector<16x384xf32> to vector<16x128xf32>
    %19 = arith.mulf %17, %18 : vector<16x128xf32>
    %20 = math.tanh %19 : vector<16x128xf32>
    %21 = vector.extract_strided_slice %11 {offsets = [0, 256], sizes = [16, 128], strides = [1, 1]} : vector<16x384xf32> to vector<16x128xf32>
    %22 = arith.negf %21 : vector<16x128xf32>
    %23 = math.exp %22 : vector<16x128xf32>
    %cst_11 = arith.constant 1.000000e+00 : f32
    %24 = vector.broadcast %cst_11 : f32 to vector<16x128xf32>
    %25 = arith.addf %24, %23 : vector<16x128xf32>
    %26 = arith.divf %24, %25 : vector<16x128xf32>
    %27 = arith.mulf %26, %20 : vector<16x128xf32>
    %cst_12 = arith.constant 1.000000e+00 : f32
    %28 = vector.broadcast %cst_12 : f32 to vector<16x128xf32>
    %29 = arith.subf %28, %26 : vector<16x128xf32>
    %30 = arith.mulf %29, %2 : vector<16x128xf32>
    %31 = arith.addf %27, %30 : vector<16x128xf32>
    %c0_13 = arith.constant 0 : index
    %c0_14 = arith.constant 0 : index
    %32 = vector.load %arg7[%c0_13, %c0_14] : memref<16x128xf32, #tpu.memory_space<vmem>>, vector<16x128xf32>
    tpu.vector_store %arg7[%c0_13, %c0_14], %31 {strides = array<i32>} : memref<16x128xf32, #tpu.memory_space<vmem>>, vector<16x128xf32>,
    return
  }
  func.func @transform_0(%arg0: i32, %arg1: i32) -> (i32, i32) {
    %c0_i32 = arith.constant 0 : i32
    %c0_i32_0 = arith.constant 0 : i32
    return %arg1, %c0_i32 : i32, i32
  }
  func.func @transform_1(%arg0: i32, %arg1: i32) -> (i32, i32) {
    %c0_i32 = arith.constant 0 : i32
    %c0_i32_0 = arith.constant 0 : i32
    return %arg1, %c0_i32 : i32, i32
  }
  func.func @transform_2(%arg0: i32, %arg1: i32) -> (i32, i32) {
    %c0_i32 = arith.constant 0 : i32
    %c0_i32_0 = arith.constant 0 : i32
    return %c0_i32, %arg0 : i32, i32
  }
  func.func @transform_3(%arg0: i32, %arg1: i32) -> (i32, i32) {
    %c0_i32 = arith.constant 0 : i32
    %c0_i32_0 = arith.constant 0 : i32
    return %c0_i32, %arg0 : i32, i32
  }
  func.func @transform_4(%arg0: i32, %arg1: i32) -> (i32, i32) {
    %c0_i32 = arith.constant 0 : i32
    %c0_i32_0 = arith.constant 0 : i32
    return %c0_i32, %arg0 : i32, i32
  }
  func.func @transform_5(%arg0: i32, %arg1: i32) -> (i32, i32) {
    %c0_i32 = arith.constant 0 : i32
    return %arg1, %arg0 : i32, i32
  }
}

</mosaic_0001>

<llo_original>
// kernel: tpu_custom_call.1
$region0: #{tpu_custom_call.1}
  #allocation0 [shape = 'u32[]', space=smem, size = 0x4, offset = 0x4, fixed_abs, tag = 'smem constant byte address 0x4 - core index']
  #allocation1 [shape = 'u32[144,128]{1,0:T(1,128)}', space=vmem, size = 0x12000, scoped, tag = 'internal scratch']
  %s0 = inlined_call_operand.hbm [shape: f32[16,32], index: 0, kind: input, shape index: {}]
  %s1 = inlined_call_operand.hbm [shape: f32[16,128], index: 1, kind: input, shape index: {}]
  %s2 = inlined_call_operand.hbm [shape: bf16[32,384], index: 2, kind: input, shape index: {}]
  %s3 = inlined_call_operand.hbm [shape: bf16[128,384], index: 3, kind: input, shape index: {}]
  %s4 = inlined_call_operand.vmem [shape: f32[1,384], index: 4, kind: input, shape index: {}]
  %s5 = inlined_call_operand.hbm [shape: f32[16,128], index: 5, kind: output, shape index: {}]
  %s6 = sld [smem:[#allocation0]]
  $region46: #{tpu_custom_call.1} parent=0
    _
  %s8 = ssub.s32 1, %s6
  %s9 = scalar_select 0, %s8, %s6
  $region1: #{tpu_custom_call.1} parent=0
    #allocation2 [shape = 'u8[8192]{0}', space=vmem, size = 0x2000, scoped, tag = 'input window, operand 0, single buffered']
    #allocation3 [shape = 's32[1]{0}', space=sflag, size = 0x4, scoped, tag = 'scoped memory for tpu_custom_call.1']
    #allocation4 [shape = 's32[1]{0}', space=sflag, size = 0x4, scoped, tag = 'scoped memory for tpu_custom_call.1']
    #allocation5 [shape = 'u8[8192]{0}', space=vmem, size = 0x2000, scoped, tag = 'input window, operand 1, single buffered']
    #allocation6 [shape = 's32[1]{0}', space=sflag, size = 0x4, scoped, tag = 'scoped memory for tpu_custom_call.1']
    #allocation7 [shape = 'u8[24576]{0}', space=vmem, size = 0x6000, scoped, tag = 'input window, operand 2, single buffered']
    #allocation8 [shape = 'u8[98304]{0}', space=vmem, size = 0x18000, scoped, tag = 'input window, operand 3, single buffered']
    #allocation9 [shape = 's32[1]{0}', space=sflag, size = 0x4, scoped, tag = 'scoped memory for tpu_custom_call.1']
    #allocation10 [shape = 'u8[8192]{0}', space=vmem, size = 0x2000, scoped, tag = 'output window, operand 0, single buffered']
    %10 = vsyncpa [#allocation3], 0
    %11 = vsyncpa [#allocation6], 0
    %12 = vsyncpa [#allocation9], 0
    %13 = vsyncpa [#allocation4], 0
    // Predicated region
    $region2: #{tpu_custom_call.1} parent=1 // pred_check
      _
    $region3: #{tpu_custom_call.1} parent=1 // pred_check_branch
      %15 = sbr.rel (0) target = $region5
    $region4: #{tpu_custom_call.1} parent=1 // pred_region
      %s17 = ssub.s32 256, 256
      %18 = vsyncadd [#allocation3], %s17
      %s19 = sshll.u32 [#allocation2], 4
      %s20 = int_to_ptr.vmem [resolvable:$true] %s19
      %25 = dma.hbm_to_vmem [thread:$0]  %s0, 256, %s20, [#allocation3], 128, 128, 8
    $region5: #{tpu_custom_call.1} parent=1 // pred_fallthru
      _
    // Predicated region
    $region6: #{tpu_custom_call.1} parent=1 // pred_check
      _
    $region7: #{tpu_custom_call.1} parent=1 // pred_check_branch
      %27 = sbr.rel (0) target = $region9
    $region8: #{tpu_custom_call.1} parent=1 // pred_region
      %s29 = ssub.s32 256, 256
      %30 = vsyncadd [#allocation6], %s29
      %s31 = sshll.u32 [#allocation5], 4
      %s32 = int_to_ptr.vmem [resolvable:$true] %s31
      %37 = dma.hbm_to_vmem [thread:$0]  %s1, 256, %s32, [#allocation6], 128, 128, 8
    $region9: #{tpu_custom_call.1} parent=1 // pred_fallthru
      _
    // Predicated region
    $region10: #{tpu_custom_call.1} parent=1 // pred_check
      _
    $region11: #{tpu_custom_call.1} parent=1 // pred_check_branch
      %39 = sbr.rel (0) target = $region13
    $region12: #{tpu_custom_call.1} parent=1 // pred_region
      %s41 = ssub.s32 768, 768
      %42 = vsyncadd [#allocation6], %s41
      %s43 = sshll.u32 [#allocation7], 4
      %s44 = int_to_ptr.vmem [resolvable:$true] %s43
      %49 = dma.hbm_to_vmem [thread:$0]  %s2, 768, %s44, [#allocation6], 192, 192, 12
    $region13: #{tpu_custom_call.1} parent=1 // pred_fallthru
      _
    // Predicated region
    $region14: #{tpu_custom_call.1} parent=1 // pred_check
      _
    $region15: #{tpu_custom_call.1} parent=1 // pred_check_branch
      %51 = sbr.rel (0) target = $region17
    $region16: #{tpu_custom_call.1} parent=1 // pred_region
      %s53 = ssub.s32 3072, 3072
      %54 = vsyncadd [#allocation9], %s53
      %s55 = sshll.u32 [#allocation8], 4
      %s56 = int_to_ptr.vmem [resolvable:$true] %s55
      %61 = dma.hbm_to_vmem [thread:$0]  %s3, 3072, %s56, [#allocation9], 192, 192, 12
    $region17: #{tpu_custom_call.1} parent=1 // pred_fallthru
      _
    // Predicated region
    $region18: #{tpu_custom_call.1} parent=1 // pred_check
      _
    $region19: #{tpu_custom_call.1} parent=1 // pred_check_branch
      %63 = sbr.rel (0) target = $region21
    $region20: #{tpu_custom_call.1} parent=1 // pred_region
      _
    $region21: #{tpu_custom_call.1} parent=1 // pred_fallthru
      _
    // Predicated region
    $region22: #{tpu_custom_call.1} parent=1 // pred_check
      _
    $region23: #{tpu_custom_call.1} parent=1 // pred_check_branch
      %65 = sbr.rel (0) target = $region25
    $region24: #{tpu_custom_call.1} parent=1 // pred_region
      %66 = dma.done [#allocation3], 256
    $region25: #{tpu_custom_call.1} parent=1 // pred_fallthru
      _
    // Predicated region
    $region26: #{tpu_custom_call.1} parent=1 // pred_check
      _
    $region27: #{tpu_custom_call.1} parent=1 // pred_check_branch
      %68 = sbr.rel (0) target = $region29
    $region28: #{tpu_custom_call.1} parent=1 // pred_region
      %69 = dma.done [#allocation6], 256
    $region29: #{tpu_custom_call.1} parent=1 // pred_fallthru
      _
    // Predicated region
    $region30: #{tpu_custom_call.1} parent=1 // pred_check
      _
    $region31: #{tpu_custom_call.1} parent=1 // pred_check_branch
      %71 = sbr.rel (0) target = $region33
    $region32: #{tpu_custom_call.1} parent=1 // pred_region
      %72 = dma.done [#allocation6], 768
    $region33: #{tpu_custom_call.1} parent=1 // pred_fallthru
      _
    // Predicated region
    $region34: #{tpu_custom_call.1} parent=1 // pred_check
      _
    $region35: #{tpu_custom_call.1} parent=1 // pred_check_branch
      %74 = sbr.rel (0) target = $region37
    $region36: #{tpu_custom_call.1} parent=1 // pred_region
      %75 = dma.done [#allocation9], 3072
    $region37: #{tpu_custom_call.1} parent=1 // pred_fallthru
      _
    %v77 = vld [vmem:[#allocation2] sm:$0xff]
    %v78 = vld [vmem:[#allocation2 + $0x8] sm:$0xff]
    %v79 = vpack.c.bf16 %v78, %v77
    %v80 = vld [vmem:[#allocation5] sm:$0xff]
    %v81 = vld [vmem:[#allocation5 + $0x8] sm:$0xff]
    %v82 = vpack.c.bf16 %v81, %v80
    %v83 = vld [vmem:[#allocation7] sm:$0xff]
    %v84 = vld [vmem:[#allocation7 + $0x8] sm:$0xf]
    %v85 = vld [vmem:[#allocation7 + $0xc] sm:$0xff]
    %v86 = vld [vmem:[#allocation7 + $0x14] sm:$0xf]
    %v87 = vld [vmem:[#allocation7 + $0x18] sm:$0xff]
    %v88 = vld [vmem:[#allocation7 + $0x20] sm:$0xf]
    %v89 = vld [vmem:[#allocation7 + $0x24] sm:$0xff]
    %v90 = vld [vmem:[#allocation7 + $0x2c] sm:$0xf]
    %v91 = vld [vmem:[#allocation8] sm:$0xff]
    %v92 = vld [vmem:[#allocation8 + $0x8] sm:$0xf]
    %v93 = vld [vmem:[#allocation8 + $0xc] sm:$0xff]
    %v94 = vld [vmem:[#allocation8 + $0x14] sm:$0xf]
    %v95 = vld [vmem:[#allocation8 + $0x18] sm:$0xff]
    %v96 = vld [vmem:[#allocation8 + $0x20] sm:$0xf]
    %v97 = vld [vmem:[#allocation8 + $0x24] sm:$0xff]
    %v98 = vld [vmem:[#allocation8 + $0x2c] sm:$0xf]
    %v99 = vld [vmem:[#allocation8 + $0x30] sm:$0xff]
    %v100 = vld [vmem:[#allocation8 + $0x38] sm:$0xf]
    %v101 = vld [vmem:[#allocation8 + $0x3c] sm:$0xff]
    %v102 = vld [vmem:[#allocation8 + $0x44] sm:$0xf]
    %v103 = vld [vmem:[#allocation8 + $0x48] sm:$0xff]
    %v104 = vld [vmem:[#allocation8 + $0x50] sm:$0xf]
    %v105 = vld [vmem:[#allocation8 + $0x54] sm:$0xff]
    %v106 = vld [vmem:[#allocation8 + $0x5c] sm:$0xf]
    %v107 = vld [vmem:[#allocation8 + $0x60] sm:$0xff]
    %v108 = vld [vmem:[#allocation8 + $0x68] sm:$0xf]
    %v109 = vld [vmem:[#allocation8 + $0x6c] sm:$0xff]
    %v110 = vld [vmem:[#allocation8 + $0x74] sm:$0xf]
    %v111 = vld [vmem:[#allocation8 + $0x78] sm:$0xff]
    %v112 = vld [vmem:[#allocation8 + $0x80] sm:$0xf]
    %v113 = vld [vmem:[#allocation8 + $0x84] sm:$0xff]
    %v114 = vld [vmem:[#allocation8 + $0x8c] sm:$0xf]
    %v115 = vld [vmem:[#allocation8 + $0x90] sm:$0xff]
    %v116 = vld [vmem:[#allocation8 + $0x98] sm:$0xf]
    %v117 = vld [vmem:[#allocation8 + $0x9c] sm:$0xff]
    %v118 = vld [vmem:[#allocation8 + $0xa4] sm:$0xf]
    %v119 = vld [vmem:[#allocation8 + $0xa8] sm:$0xff]
    %v120 = vld [vmem:[#allocation8 + $0xb0] sm:$0xf]
    %v121 = vld [vmem:[#allocation8 + $0xb4] sm:$0xff]
    %v122 = vld [vmem:[#allocation8 + $0xbc] sm:$0xf]
    %v155 = vunpack.c.l.b16 %v91
    %v156 = vunpack.c.h.b16 %v91
    %v157 = vunpack.c.l.b16 %v92
    %v158 = vunpack.c.l.b16 %v93
    %v159 = vunpack.c.h.b16 %v93
    %v160 = vunpack.c.l.b16 %v94
    %v161 = vunpack.c.l.b16 %v95
    %v162 = vunpack.c.h.b16 %v95
    %v163 = vunpack.c.l.b16 %v96
    %v164 = vunpack.c.l.b16 %v97
    %v165 = vunpack.c.h.b16 %v97
    %v166 = vunpack.c.l.b16 %v98
    %v167 = vunpack.c.l.b16 %v99
    %v168 = vunpack.c.h.b16 %v99
    %v169 = vunpack.c.l.b16 %v100
    %v170 = vunpack.c.l.b16 %v101
    %v171 = vunpack.c.h.b16 %v101
    %v172 = vunpack.c.l.b16 %v102
    %v173 = vunpack.c.l.b16 %v103
    %v174 = vunpack.c.h.b16 %v103
    %v175 = vunpack.c.l.b16 %v104
    %v176 = vunpack.c.l.b16 %v105
    %v177 = vunpack.c.h.b16 %v105
    %v178 = vunpack.c.l.b16 %v106
    %v179 = vunpack.c.l.b16 %v107
    %v180 = vunpack.c.h.b16 %v107
    %v181 = vunpack.c.l.b16 %v108
    %v182 = vunpack.c.l.b16 %v109
    %v183 = vunpack.c.h.b16 %v109
    %v184 = vunpack.c.l.b16 %v110
    %v185 = vunpack.c.l.b16 %v111
    %v186 = vunpack.c.h.b16 %v111
    %v187 = vunpack.c.l.b16 %v112
    %v188 = vunpack.c.l.b16 %v113
    %v189 = vunpack.c.h.b16 %v113
    %v190 = vunpack.c.l.b16 %v114
    %v191 = vunpack.c.l.b16 %v115
    %v192 = vunpack.c.h.b16 %v115
    %v193 = vunpack.c.l.b16 %v116
    %v194 = vunpack.c.l.b16 %v117
    %v195 = vunpack.c.h.b16 %v117
    %v196 = vunpack.c.l.b16 %v118
    %v197 = vunpack.c.l.b16 %v119
    %v198 = vunpack.c.h.b16 %v119
    %v199 = vunpack.c.l.b16 %v120
    %v200 = vunpack.c.l.b16 %v121
    %v201 = vunpack.c.h.b16 %v121
    %v202 = vunpack.c.l.b16 %v122
    %v203 = vpack.c.b16 %v158, %v155
    %v204 = vpack.c.b16 %v159, %v156
    %v205 = vpack.c.b16 %v160, %v157
    %v206 = vpack.c.b16 %v164, %v161
    %v207 = vpack.c.b16 %v165, %v162
    %v208 = vpack.c.b16 %v166, %v163
    %v209 = vpack.c.b16 %v170, %v167
    %v210 = vpack.c.b16 %v171, %v168
    %v211 = vpack.c.b16 %v172, %v169
    %v212 = vpack.c.b16 %v176, %v173
    %v213 = vpack.c.b16 %v177, %v174
    %v214 = vpack.c.b16 %v178, %v175
    %v215 = vpack.c.b16 %v182, %v179
    %v216 = vpack.c.b16 %v183, %v180
    %v217 = vpack.c.b16 %v184, %v181
    %v218 = vpack.c.b16 %v188, %v185
    %v219 = vpack.c.b16 %v189, %v186
    %v220 = vpack.c.b16 %v190, %v187
    %v221 = vpack.c.b16 %v194, %v191
    %v222 = vpack.c.b16 %v195, %v192
    %v223 = vpack.c.b16 %v196, %v193
    %v224 = vpack.c.b16 %v200, %v197
    %v225 = vpack.c.b16 %v201, %v198
    %v226 = vpack.c.b16 %v202, %v199
    %251 = vmatprep.subr.bf16.mxu0 %v225
    %252 = vmatpush1.bf16.msra.mxu0 %v224
    %253 = vmatprep.subr.bf16.mxu0 %v222
    %254 = vmatpush1.bf16.msra.mxu0 %v221
    %255 = vmatprep.subr.bf16.mxu0 %v219
    %256 = vmatpush1.bf16.msra.mxu0 %v218
    %257 = vmatprep.subr.bf16.mxu0 %v216
    %258 = vmatpush1.bf16.msra.mxu0 %v215
    %259 = vmatprep.subr.bf16.mxu0 %v213
    %260 = vmatpush1.bf16.msra.mxu0 %v212
    %261 = vmatprep.subr.bf16.mxu0 %v210
    %262 = vmatpush1.bf16.msra.mxu0 %v209
    %263 = vmatprep.subr.bf16.mxu0 %v207
    %264 = vmatpush1.bf16.msra.mxu0 %v206
    %265 = vmatprep.subr.bf16.mxu0 %v204
    %266 = vmatpush1.bf16.msra.mxu0 %v203
    %267 = vmatprep.subr.bf16.mxu0 0
    %268 = vmatpush2.bf16.msra.mxu0 0
    %269 = vmatprep.subr.bf16.mxu0 0
    %270 = vmatpush2.bf16.msra.mxu0 0
    %271 = vmatprep.subr.bf16.mxu0 0
    %272 = vmatpush2.bf16.msra.mxu0 0
    %273 = vmatprep.subr.bf16.mxu0 0
    %274 = vmatpush2.bf16.msra.mxu0 0
    %275 = vmatprep.subr.bf16.mxu0 0
    %276 = vmatpush2.bf16.msra.mxu0 0
    %277 = vmatprep.subr.bf16.mxu0 0
    %278 = vmatpush2.bf16.msra.mxu0 0
    %279 = vmatprep.subr.bf16.mxu0 0
    %280 = vmatpush2.bf16.msra.mxu0 0
    %281 = vmatprep.subr.bf16.mxu0 0
    %282 = vmatpush2.bf16.msra.mxu0 0
    %283 = vmatprep.mubr.bf16.mxu0 0
    %284 = vmatmul.mubr.bf16.gmra.mxu0 %v82
    %v285 = vpop.f32.mrf.mxu0
    %v286 = vadd.f32 0.0, %v285
    %v287 = vpop.f32.mrf.mxu0
    %v288 = vadd.f32 0.0, %v287
    %v289 = vpop.f32.mrf.mxu0
    %v290 = vadd.f32 0.0, %v289
    %v291 = vpop.f32.mrf.mxu0
    %v292 = vadd.f32 0.0, %v291
    %293 = vdwg.mxu0
    %294 = vmatprep.subr.bf16.mxu0 0
    %295 = vmatpush1.bf16.msra.mxu0 %v226
    %296 = vmatprep.subr.bf16.mxu0 0
    %297 = vmatpush1.bf16.msra.mxu0 %v223
    %298 = vmatprep.subr.bf16.mxu0 0
    %299 = vmatpush1.bf16.msra.mxu0 %v220
    %300 = vmatprep.subr.bf16.mxu0 0
    %301 = vmatpush1.bf16.msra.mxu0 %v217
    %302 = vmatprep.subr.bf16.mxu0 0
    %303 = vmatpush1.bf16.msra.mxu0 %v214
    %304 = vmatprep.subr.bf16.mxu0 0
    %305 = vmatpush1.bf16.msra.mxu0 %v211
    %306 = vmatprep.subr.bf16.mxu0 0
    %307 = vmatpush1.bf16.msra.mxu0 %v208
    %308 = vmatprep.subr.bf16.mxu0 0
    %309 = vmatpush1.bf16.msra.mxu0 %v205
    %310 = vmatprep.subr.bf16.mxu0 0
    %311 = vmatpush2.bf16.msra.mxu0 0
    %312 = vmatprep.subr.bf16.mxu0 0
    %313 = vmatpush2.bf16.msra.mxu0 0
    %314 = vmatprep.subr.bf16.mxu0 0
    %315 = vmatpush2.bf16.msra.mxu0 0
    %316 = vmatprep.subr.bf16.mxu0 0
    %317 = vmatpush2.bf16.msra.mxu0 0
    %318 = vmatprep.subr.bf16.mxu0 0
    %319 = vmatpush2.bf16.msra.mxu0 0
    %320 = vmatprep.subr.bf16.mxu0 0
    %321 = vmatpush2.bf16.msra.mxu0 0
    %322 = vmatprep.subr.bf16.mxu0 0
    %323 = vmatpush2.bf16.msra.mxu0 0
    %324 = vmatprep.subr.bf16.mxu0 0
    %325 = vmatpush2.bf16.msra.mxu0 0
    %326 = vmatprep.mubr.bf16.mxu0 0
    %327 = vmatmul.mubr.bf16.gmra.mxu0 %v82
    %v328 = vpop.f32.mrf.mxu0
    %v329 = vadd.f32 0.0, %v328
    %v330 = vpop.f32.mrf.mxu0
    %v331 = vpop.f32.mrf.mxu0
    %v332 = vadd.f32 0.0, %v331
    %v333 = vpop.f32.mrf.mxu0
    %334 = vdwg.mxu0
    %v343 = vunpack.c.l.b16 %v83
    %v344 = vunpack.c.h.b16 %v83
    %v345 = vunpack.c.l.b16 %v84
    %v346 = vunpack.c.l.b16 %v85
    %v347 = vunpack.c.h.b16 %v85
    %v348 = vunpack.c.l.b16 %v86
    %v349 = vunpack.c.l.b16 %v87
    %v350 = vunpack.c.h.b16 %v87
    %v351 = vunpack.c.l.b16 %v88
    %v352 = vunpack.c.l.b16 %v89
    %v353 = vunpack.c.h.b16 %v89
    %v354 = vunpack.c.l.b16 %v90
    %v355 = vpack.c.b16 %v346, %v343
    %v356 = vpack.c.b16 %v347, %v344
    %v357 = vpack.c.b16 %v348, %v345
    %v358 = vpack.c.b16 %v352, %v349
    %v359 = vpack.c.b16 %v353, %v350
    %v360 = vpack.c.b16 %v354, %v351
    %vm367 = vcmask 261120
    %v369 = vsel %vm367, %v79, 0
    %371 = vmatprep.subr.bf16.mxu0 0
    %372 = vmatpush1.bf16.msra.mxu0 0
    %373 = vmatprep.subr.bf16.mxu0 0
    %374 = vmatpush1.bf16.msra.mxu0 0
    %375 = vmatprep.subr.bf16.mxu0 0
    %376 = vmatpush1.bf16.msra.mxu0 0
    %377 = vmatprep.subr.bf16.mxu0 0
    %378 = vmatpush1.bf16.msra.mxu0 0
    %379 = vmatprep.subr.bf16.mxu0 0
    %380 = vmatpush1.bf16.msra.mxu0 0
    %381 = vmatprep.subr.bf16.mxu0 0
    %382 = vmatpush1.bf16.msra.mxu0 0
    %383 = vmatprep.subr.bf16.mxu0 %v359
    %384 = vmatpush1.bf16.msra.mxu0 %v358
    %385 = vmatprep.subr.bf16.mxu0 %v356
    %386 = vmatpush1.bf16.msra.mxu0 %v355
    %387 = vmatprep.subr.bf16.mxu0 0
    %388 = vmatpush2.bf16.msra.mxu0 0
    %389 = vmatprep.subr.bf16.mxu0 0
    %390 = vmatpush2.bf16.msra.mxu0 0
    %391 = vmatprep.subr.bf16.mxu0 0
    %392 = vmatpush2.bf16.msra.mxu0 0
    %393 = vmatprep.subr.bf16.mxu0 0
    %394 = vmatpush2.bf16.msra.mxu0 0
    %395 = vmatprep.subr.bf16.mxu0 0
    %396 = vmatpush2.bf16.msra.mxu0 0
    %397 = vmatprep.subr.bf16.mxu0 0
    %398 = vmatpush2.bf16.msra.mxu0 0
    %399 = vmatprep.subr.bf16.mxu0 0
    %400 = vmatpush2.bf16.msra.mxu0 0
    %401 = vmatprep.subr.bf16.mxu0 0
    %402 = vmatpush2.bf16.msra.mxu0 0
    %403 = vmatprep.mubr.bf16.mxu0 0
    %404 = vmatmul.mubr.bf16.gmra.mxu0 %v369
    %v405 = vpop.f32.mrf.mxu0
    %v406 = vadd.f32 %v286, %v405
    %v407 = vpop.f32.mrf.mxu0
    %v408 = vadd.f32 %v288, %v407
    %v409 = vpop.f32.mrf.mxu0
    %v410 = vadd.f32 %v290, %v409
    %v411 = vpop.f32.mrf.mxu0
    %v412 = vadd.f32 %v292, %v411
    %413 = vdwg.mxu0
    %414 = vmatprep.subr.bf16.mxu0 0
    %415 = vmatpush1.bf16.msra.mxu0 0
    %416 = vmatprep.subr.bf16.mxu0 0
    %417 = vmatpush1.bf16.msra.mxu0 0
    %418 = vmatprep.subr.bf16.mxu0 0
    %419 = vmatpush1.bf16.msra.mxu0 0
    %420 = vmatprep.subr.bf16.mxu0 0
    %421 = vmatpush1.bf16.msra.mxu0 0
    %422 = vmatprep.subr.bf16.mxu0 0
    %423 = vmatpush1.bf16.msra.mxu0 0
    %424 = vmatprep.subr.bf16.mxu0 0
    %425 = vmatpush1.bf16.msra.mxu0 0
    %426 = vmatprep.subr.bf16.mxu0 0
    %427 = vmatpush1.bf16.msra.mxu0 %v360
    %428 = vmatprep.subr.bf16.mxu0 0
    %429 = vmatpush1.bf16.msra.mxu0 %v357
    %430 = vmatprep.subr.bf16.mxu0 0
    %431 = vmatpush2.bf16.msra.mxu0 0
    %432 = vmatprep.subr.bf16.mxu0 0
    %433 = vmatpush2.bf16.msra.mxu0 0
    %434 = vmatprep.subr.bf16.mxu0 0
    %435 = vmatpush2.bf16.msra.mxu0 0
    %436 = vmatprep.subr.bf16.mxu0 0
    %437 = vmatpush2.bf16.msra.mxu0 0
    %438 = vmatprep.subr.bf16.mxu0 0
    %439 = vmatpush2.bf16.msra.mxu0 0
    %440 = vmatprep.subr.bf16.mxu0 0
    %441 = vmatpush2.bf16.msra.mxu0 0
    %442 = vmatprep.subr.bf16.mxu0 0
    %443 = vmatpush2.bf16.msra.mxu0 0
    %444 = vmatprep.subr.bf16.mxu0 0
    %445 = vmatpush2.bf16.msra.mxu0 0
    %446 = vmatprep.mubr.bf16.mxu0 0
    %447 = vmatmul.mubr.bf16.gmra.mxu0 %v369
    %v448 = vpop.f32.mrf.mxu0
    %v449 = vadd.f32 %v329, %v448
    %v450 = vpop.f32.mrf.mxu0
    %v451 = vpop.f32.mrf.mxu0
    %v452 = vadd.f32 %v332, %v451
    %v453 = vpop.f32.mrf.mxu0
    %454 = vdwg.mxu0
    %v455 = vld [vmem:[%s4] sm:$0x7]
    %v457 = vlaneseq
    %v458 = vshrl.u32 %v457, 7
    %v459 = vsub.s32 0, %v458
    %v460 = vrot.slane %v455, %v459
    %v461 = vlaneseq
    %v462 = vshrl.u32 %v461, 7
    %v463 = vsub.s32 1, %v462
    %v464 = vrot.slane %v455, %v463
    %v465 = vlaneseq
    %v466 = vshrl.u32 %v465, 7
    %v467 = vsub.s32 2, %v466
    %v468 = vrot.slane %v455, %v467
    %v472 = vadd.f32 %v406, %v460
    %v473 = vadd.f32 %v408, %v464
    %v474 = vadd.f32 %v449, %v468
    %v475 = vadd.f32 %v410, %v460
    %v476 = vadd.f32 %v412, %v464
    %v477 = vadd.f32 %v452, %v468
    %v478 = vxor.u32 %v472, 2147483648
    %v479 = vxor.u32 %v475, 2147483648
    %v480 = vmul.f32 %v478, 1.442695
    %v481 = vpow.pop %v480
    %v482 = vmul.f32 %v479, 1.442695
    %v483 = vpow.pop %v482
    %v484 = vadd.f32 %v481, 1.0
    %v485 = vadd.f32 %v483, 1.0
    %v486 = vrcp.pop %v484
    %v487 = vmul.f32 1.0, %v486
    %v488 = vrcp.pop %v485
    %v489 = vmul.f32 1.0, %v488
    %v490 = vmul.f32 %v487, %v473
    %v491 = vmul.f32 %v489, %v476
    %v492 = vtanh.pop %v490
    %v493 = vtanh.pop %v491
    %v494 = vxor.u32 %v474, 2147483648
    %v495 = vxor.u32 %v477, 2147483648
    %v496 = vmul.f32 %v494, 1.442695
    %v497 = vpow.pop %v496
    %v498 = vmul.f32 %v495, 1.442695
    %v499 = vpow.pop %v498
    %v500 = vadd.f32 %v497, 1.0
    %v501 = vadd.f32 %v499, 1.0
    %v502 = vrcp.pop %v500
    %v503 = vmul.f32 1.0, %v502
    %v504 = vrcp.pop %v501
    %v505 = vmul.f32 1.0, %v504
    %v506 = vmul.f32 %v503, %v492
    %v507 = vmul.f32 %v505, %v493
    %v508 = vsub.f32 1.0, %v503
    %v509 = vsub.f32 1.0, %v505
    %v510 = vmul.f32 %v508, %v80
    %v511 = vmul.f32 %v509, %v81
    %v512 = vadd.f32 %v506, %v510
    %v513 = vadd.f32 %v507, %v511
    %514 = vst [vmem:[#allocation10] sm:$0xff] %v512
    %515 = vst [vmem:[#allocation10 + $0x8] sm:$0xff] %v513
    // Predicated region
    $region38: #{tpu_custom_call.1} parent=1 // pred_check
      _
    $region39: #{tpu_custom_call.1} parent=1 // pred_check_branch
      %517 = sbr.rel (0) target = $region41
    $region40: #{tpu_custom_call.1} parent=1 // pred_region
      %s519 = ssub.s32 256, 256
      %520 = vsyncadd [#allocation4], %s519
      %s521 = sshll.u32 [#allocation10], 4
      %s522 = int_to_ptr.vmem [resolvable:$true] %s521
      %527 = dma.vmem_to_hbm [thread:$0]  %s522, 256, %s5, [#allocation4], 128, 128, 8
    $region41: #{tpu_custom_call.1} parent=1 // pred_fallthru
      _
    // Predicated region
    $region42: #{tpu_custom_call.1} parent=1 // pred_check
      _
    $region43: #{tpu_custom_call.1} parent=1 // pred_check_branch
      %529 = sbr.rel (0) target = $region45
    $region44: #{tpu_custom_call.1} parent=1 // pred_region
      %530 = dma.done [#allocation4], 256
    $region45: #{tpu_custom_call.1} parent=1 // pred_fallthru
      _
    %531 = vsyncpa [#allocation3], 1
    %532 = vsyncpa [#allocation6], 1
    %533 = vsyncpa [#allocation9], 1
    %534 = vsyncpa [#allocation4], 1

</llo_original>
